<compile_context>
chip_gen: v6e
topology: v6e:2x2x1
jax: 0.10.0
libtpu: 0.0.40
codegen_flags: <defaults>
</compile_context>

<pallas_src>
import jax
import jax.numpy as jnp
from jax.experimental import pallas as pl
from jax.experimental.pallas import tpu as pltpu


def se_kernel(x_ref, w1t_ref, w2t_ref, o_ref):
    # x_ref:  (nb, C, HW)  nb batch elements per grid step
    # w1t_ref:(Ch, C)      first FC weight, pre-scaled by 1/HW
    # w2t_ref:(C, Ch)      second FC weight
    # o_ref:  (nb, C, HW)
    nb, _, hw = x_ref.shape
    w1t = w1t_ref[...]
    w2t = w2t_ref[...]
    ones = jnp.ones((hw, 1), dtype=x_ref.dtype)

    # Static unroll over the (small, statically bounded) per-block batch count.
    for b in range(nb):
        x = x_ref[b]                                                     # (C, HW)

        # Squeeze: sum over spatial positions (lanes) via the MXU; the 1/HW
        # mean normalization is folded into w1t.  f32 accumulation always.
        y = jnp.dot(x, ones, preferred_element_type=jnp.float32)        # (C, 1)

        # Excite in column form (C stays on sublanes -> the gate broadcasts
        # over lanes for the final scale with no relayout).  Tiny matmuls,
        # fully hidden under the DMA of the neighbouring blocks.
        h = jnp.dot(w1t, y, preferred_element_type=jnp.float32)         # (Ch, 1)
        h = jnp.maximum(h, 0.0)
        s = jnp.dot(w2t, h, preferred_element_type=jnp.float32)         # (C, 1)
        s = jax.nn.sigmoid(s)

        # Scale: per-channel gate broadcast across HW (lanes), in x's dtype.
        o_ref[b] = x * s.astype(x_ref.dtype)


def _batches_per_block(B, per_elem_bytes, cap_bytes=4 << 20, max_unroll=8):
    """Pick how many batch elements to pack into one grid-step block."""
    nb = max(1, min(B, cap_bytes // max(per_elem_bytes, 1)))
    nb = min(nb, max_unroll)           # bound the static unroll / trace size
    if B >= 2:
        nb = min(nb, B // 2)           # keep >= 2 grid steps: pipelining + megacore
    nb = max(nb, 1)
    while B % nb:                      # must divide B so blocks tile exactly
        nb -= 1
    return nb


def se_forward(x_nchw, w1, w2):
    """x_nchw: (B, C, H, W); w1: (C, C//r) == W1.T of nn.Linear; w2: (C//r, C) == W2.T."""
    B, C, H, W = x_nchw.shape
    HW = H * W
    Ch = w1.shape[1]
    x3 = x_nchw.reshape(B, C, HW)

    # Fold 1/HW into the first FC and transpose both weights into the column
    # form used by the kernel:  relu((sum(x)/HW) @ w1) == relu(sum(x) @ (w1/HW)).
    w1t = (w1.T / HW).astype(jnp.float32)   # (Ch, C)
    w2t = w2.T.astype(jnp.float32)          # (C, Ch)

    itemsize = jnp.dtype(x_nchw.dtype).itemsize
    nb = _batches_per_block(B, C * HW * itemsize)
    grid = (B // nb,)

    cost = pl.CostEstimate(
        flops=2 * B * C * HW            # squeeze (dot with ones)
        + 4 * B * C * Ch                # two tiny FCs
        + B * C * HW,                   # final scale
        transcendentals=B * C,          # sigmoid
        bytes_accessed=2 * B * C * HW * itemsize,  # x in + out (weights negligible)
    )

    # TODO(synk): for very large C*HW per batch element (block > scoped VMEM
    # budget, e.g. v7x 64 MiB physical), add a spatial-chunk grid axis
    # (squeeze pass + scale pass) instead of one resident block per element.
    # Note: if x is dead after this op, input_output_aliases={2: 0} would avoid
    # a second full-size HBM buffer; left off since the test reuses x.
    out = pl.pallas_call(
        se_kernel,
        out_shape=jax.ShapeDtypeStruct((B, C, HW), x_nchw.dtype),
        grid=grid,
        in_specs=[
            pl.BlockSpec((nb, C, HW), lambda b: (b, 0, 0)),
            pl.BlockSpec((Ch, C), lambda b: (0, 0)),
            pl.BlockSpec((C, Ch), lambda b: (0, 0)),
        ],
        out_specs=pl.BlockSpec((nb, C, HW), lambda b: (b, 0, 0)),
        compiler_params=pltpu.CompilerParams(
            dimension_semantics=("parallel",),
        ),
        cost_estimate=cost,
    )(x3, w1t, w2t)

    return out.reshape(B, C, H, W)


def se_reference(x_nchw, w1, w2):
    xf = x_nchw.astype(jnp.float32)
    y = jnp.mean(xf, axis=(2, 3))                     # (B, C)
    h = jnp.maximum(y @ w1, 0.0)
    s = jax.nn.sigmoid(h @ w2)                        # (B, C)
    return xf * s[:, :, None, None]


if __name__ == "__main__":
    # Small shapes consistent with the module: reduction=16 needs C >= 16.
    B, C, H, W = 4, 64, 16, 16
    reduction = 16
    Ch = C // reduction                               # hidden = 4

    key = jax.random.PRNGKey(0)
    kx, k1, k2 = jax.random.split(key, 3)
    x = jax.random.normal(kx, (B, C, H, W), dtype=jnp.float32)
    # Deterministic synthetic weights (stored as (in, out), i.e. W.T of nn.Linear).
    w1 = jax.random.normal(k1, (C, Ch), dtype=jnp.float32) * 0.1
    w2 = jax.random.normal(k2, (Ch, C), dtype=jnp.float32) * 0.1

    # f32 path: strict check against the reference.
    out = jax.block_until_ready(se_forward(x, w1, w2))
    ref = jax.block_until_ready(se_reference(x, w1, w2))
    assert out.shape == (B, C, H, W)
    assert jnp.allclose(out, ref, atol=1e-4, rtol=1e-4), "f32 mismatch vs reference"

    # bf16 I/O path: halves HBM traffic on this bandwidth-bound op; the gate is
    # still computed with f32 accumulation, so only output rounding differs.
    x_bf = x.astype(jnp.bfloat16)
    out_bf = jax.block_until_ready(se_forward(x_bf, w1, w2))
    ref_bf = se_reference(x_bf.astype(jnp.float32), w1, w2)
    assert out_bf.dtype == jnp.bfloat16
    assert jnp.allclose(out_bf.astype(jnp.float32), ref_bf, atol=5e-2, rtol=5e-2), (
        "bf16 mismatch vs reference")

    print("KERNEL_OK")
</pallas_src>

<mosaic_0001>
module attributes {stable_mosaic.version = 11 : i64} {
  func.func @se_kernel(%arg0: i32, %arg1: memref<2x64x256xf32, #tpu.memory_space<vmem>>, %arg2: memref<4x64xf32, #tpu.memory_space<vmem>>, %arg3: memref<64x4xf32, #tpu.memory_space<vmem>>, %arg4: memref<2x64x256xf32, #tpu.memory_space<vmem>>) attributes {dimension_semantics = [#tpu.dimension_semantics<parallel>], iteration_bounds = array<i64: 2>, scalar_prefetch = 0 : i64, scratch_operands = 0 : i64, tpu.core_type = #tpu.core_type<tc>, window_params = [{transform_indices = @transform_0, window_bounds = array<i64: 2, 64, 256>}, {pipeline_mode = #tpu.pipeline_mode<synchronous>, transform_indices = @transform_1, window_bounds = array<i64: 4, 64>}, {pipeline_mode = #tpu.pipeline_mode<synchronous>, transform_indices = @transform_2, window_bounds = array<i64: 64, 4>}, {transform_indices = @transform_3, window_bounds = array<i64: 2, 64, 256>}]} {
    %c0 = arith.constant 0 : index
    %c0_0 = arith.constant 0 : index
    %0 = vector.load %arg2[%c0, %c0_0] : memref<4x64xf32, #tpu.memory_space<vmem>>, vector<4x64xf32>
    %c0_1 = arith.constant 0 : index
    %c0_2 = arith.constant 0 : index
    %1 = vector.load %arg3[%c0_1, %c0_2] : memref<64x4xf32, #tpu.memory_space<vmem>>, vector<64x4xf32>
    %cst = arith.constant 1.000000e+00 : f32
    %2 = vector.broadcast %cst : f32 to vector<256x1xf32>
    %c0_3 = arith.constant 0 : index
    %c0_4 = arith.constant 0 : index
    %c0_5 = arith.constant 0 : index
    %3 = vector.load %arg1[%c0_3, %c0_4, %c0_5] : memref<2x64x256xf32, #tpu.memory_space<vmem>>, vector<1x64x256xf32>
    %4 = vector.shape_cast %3 : vector<1x64x256xf32> to vector<64x256xf32>
    %cst_6 = arith.constant dense<0.000000e+00> : vector<64x1xf32>
    %5 = tpu.matmul %4, %2, %cst_6 {dimension_numbers = #tpu.dot_dimension_numbers<[1], [0], [0], [1], [0, 0, 1, 1], [], []>} : vector<64x256xf32>, vector<256x1xf32>, vector<64x1xf32> -> vector<64x1xf32>
    %cst_7 = arith.constant dense<0.000000e+00> : vector<4x1xf32>
    %6 = tpu.matmul %0, %5, %cst_7 {dimension_numbers = #tpu.dot_dimension_numbers<[1], [0], [0], [1], [0, 0, 1, 1], [], []>} : vector<4x64xf32>, vector<64x1xf32>, vector<4x1xf32> -> vector<4x1xf32>
    %cst_8 = arith.constant 0.000000e+00 : f32
    %7 = vector.broadcast %cst_8 : f32 to vector<4x1xf32>
    %8 = arith.maximumf %6, %7 : vector<4x1xf32>
    %cst_9 = arith.constant dense<0.000000e+00> : vector<64x1xf32>
    %9 = tpu.matmul %1, %8, %cst_9 {dimension_numbers = #tpu.dot_dimension_numbers<[1], [0], [0], [1], [0, 0, 1, 1], [], []>} : vector<64x4xf32>, vector<4x1xf32>, vector<64x1xf32> -> vector<64x1xf32>
    %10 = arith.negf %9 : vector<64x1xf32>
    %11 = math.exp %10 : vector<64x1xf32>
    %cst_10 = arith.constant 1.000000e+00 : f32
    %12 = vector.broadcast %cst_10 : f32 to vector<64x1xf32>
    %13 = arith.addf %12, %11 : vector<64x1xf32>
    %14 = arith.divf %12, %13 : vector<64x1xf32>
    %15 = vector.broadcast %14 : vector<64x1xf32> to vector<64x256xf32>
    %16 = arith.mulf %4, %15 : vector<64x256xf32>
    %c0_11 = arith.constant 0 : index
    %c0_12 = arith.constant 0 : index
    %c0_13 = arith.constant 0 : index
    %17 = vector.load %arg4[%c0_11, %c0_12, %c0_13] : memref<2x64x256xf32, #tpu.memory_space<vmem>>, vector<1x64x256xf32>
    %18 = vector.shape_cast %17 : vector<1x64x256xf32> to vector<64x256xf32>
    %19 = vector.shape_cast %16 : vector<64x256xf32> to vector<1x64x256xf32>
    tpu.vector_store %arg4[%c0_11, %c0_12, %c0_13], %19 {strides = array<i32>} : memref<2x64x256xf32, #tpu.memory_space<vmem>>, vector<1x64x256xf32>,
    %c1 = arith.constant 1 : index
    %c0_14 = arith.constant 0 : index
    %c0_15 = arith.constant 0 : index
    %20 = vector.load %arg1[%c1, %c0_14, %c0_15] : memref<2x64x256xf32, #tpu.memory_space<vmem>>, vector<1x64x256xf32>
    %21 = vector.shape_cast %20 : vector<1x64x256xf32> to vector<64x256xf32>
    %cst_16 = arith.constant dense<0.000000e+00> : vector<64x1xf32>
    %22 = tpu.matmul %21, %2, %cst_16 {dimension_numbers = #tpu.dot_dimension_numbers<[1], [0], [0], [1], [0, 0, 1, 1], [], []>} : vector<64x256xf32>, vector<256x1xf32>, vector<64x1xf32> -> vector<64x1xf32>
    %cst_17 = arith.constant dense<0.000000e+00> : vector<4x1xf32>
    %23 = tpu.matmul %0, %22, %cst_17 {dimension_numbers = #tpu.dot_dimension_numbers<[1], [0], [0], [1], [0, 0, 1, 1], [], []>} : vector<4x64xf32>, vector<64x1xf32>, vector<4x1xf32> -> vector<4x1xf32>
    %cst_18 = arith.constant 0.000000e+00 : f32
    %24 = vector.broadcast %cst_18 : f32 to vector<4x1xf32>
    %25 = arith.maximumf %23, %24 : vector<4x1xf32>
    %cst_19 = arith.constant dense<0.000000e+00> : vector<64x1xf32>
    %26 = tpu.matmul %1, %25, %cst_19 {dimension_numbers = #tpu.dot_dimension_numbers<[1], [0], [0], [1], [0, 0, 1, 1], [], []>} : vector<64x4xf32>, vector<4x1xf32>, vector<64x1xf32> -> vector<64x1xf32>
    %27 = arith.negf %26 : vector<64x1xf32>
    %28 = math.exp %27 : vector<64x1xf32>
    %cst_20 = arith.constant 1.000000e+00 : f32
    %29 = vector.broadcast %cst_20 : f32 to vector<64x1xf32>
    %30 = arith.addf %29, %28 : vector<64x1xf32>
    %31 = arith.divf %29, %30 : vector<64x1xf32>
    %32 = vector.broadcast %31 : vector<64x1xf32> to vector<64x256xf32>
    %33 = arith.mulf %21, %32 : vector<64x256xf32>
    %c1_21 = arith.constant 1 : index
    %c0_22 = arith.constant 0 : index
    %c0_23 = arith.constant 0 : index
    %34 = vector.load %arg4[%c1_21, %c0_22, %c0_23] : memref<2x64x256xf32, #tpu.memory_space<vmem>>, vector<1x64x256xf32>
    %35 = vector.shape_cast %34 : vector<1x64x256xf32> to vector<64x256xf32>
    %36 = vector.shape_cast %33 : vector<64x256xf32> to vector<1x64x256xf32>
    tpu.vector_store %arg4[%c1_21, %c0_22, %c0_23], %36 {strides = array<i32>} : memref<2x64x256xf32, #tpu.memory_space<vmem>>, vector<1x64x256xf32>,
    return
  }
  func.func @transform_0(%arg0: i32) -> (i32, i32, i32) {
    %c0_i32 = arith.constant 0 : i32
    %c0_i32_0 = arith.constant 0 : i32
    %c0_i32_1 = arith.constant 0 : i32
    return %arg0, %c0_i32, %c0_i32_0 : i32, i32, i32
  }
  func.func @transform_1(%arg0: i32) -> (i32, i32) {
    %c0_i32 = arith.constant 0 : i32
    %c0_i32_0 = arith.constant 0 : i32
    %c0_i32_1 = arith.constant 0 : i32
    return %c0_i32, %c0_i32_0 : i32, i32
  }
  func.func @transform_2(%arg0: i32) -> (i32, i32) {
    %c0_i32 = arith.constant 0 : i32
    %c0_i32_0 = arith.constant 0 : i32
    %c0_i32_1 = arith.constant 0 : i32
    return %c0_i32, %c0_i32_0 : i32, i32
  }
  func.func @transform_3(%arg0: i32) -> (i32, i32, i32) {
    %c0_i32 = arith.constant 0 : i32
    %c0_i32_0 = arith.constant 0 : i32
    %c0_i32_1 = arith.constant 0 : i32
    return %arg0, %c0_i32, %c0_i32_0 : i32, i32, i32
  }
}

</mosaic_0001>

<llo_original>
// kernel: tpu_custom_call.1
$region0: #{tpu_custom_call.1}
  #allocation0 [shape = 'u32[]', space=smem, size = 0x4, offset = 0x4, fixed_abs, tag = 'smem constant byte address 0x4 - core index']
  #allocation1 [shape = 'u32[144,128]{1,0:T(1,128)}', space=vmem, size = 0x12000, scoped, tag = 'internal scratch']
  %s0 = inlined_call_operand.hbm [shape: f32[4,64,256], index: 0, kind: input, shape index: {}]
  %s1 = inlined_call_operand.vmem [shape: f32[4,64], index: 1, kind: input, shape index: {}]
  %s2 = inlined_call_operand.vmem [shape: f32[64,4], index: 2, kind: input, shape index: {}]
  %s3 = inlined_call_operand.hbm [shape: f32[4,64,256], index: 3, kind: output, shape index: {}]
  %s4 = sld [smem:[#allocation0]]
  $region49: #{tpu_custom_call.1} parent=0
    _
  %s6 = ssub.s32 1, %s4
  %s7 = scalar_select 0, %s6, %s4
  $region1: #{tpu_custom_call.1} parent=0
    #allocation2 [shape = 'u8[262144]{0}', space=vmem, size = 0x40000, scoped, tag = 'input window, operand 0']
    #allocation3 [shape = 's32[2]{0}', space=sflag, size = 0x8, scoped, tag = 'scoped memory for tpu_custom_call.1']
    #allocation4 [shape = 's32[2]{0}', space=sflag, size = 0x8, scoped, tag = 'scoped memory for tpu_custom_call.1']
    #allocation5 [shape = 'u8[262144]{0}', space=vmem, size = 0x40000, scoped, tag = 'output window, operand 0']
    %8 = vsyncpa [#allocation3], 0
    %s9 = scalar_lea.sflag [#allocation3], 1
    %10 = vsyncpa %s9, 0
    %11 = vsyncpa [#allocation4], 0
    %s12 = scalar_lea.sflag [#allocation4], 1
    %13 = vsyncpa %s12, 0
    loop: start=0, step=1, limit=4
    $region2: #{tpu_custom_call.1} parent=1 // loop_pre_header
      _
    $region3: #{tpu_custom_call.1} parent=1 // loop_header
      %s15 = sphi 0, %s19
      %p16 = scmp.ge.s32.totalorder %s15, 4
      %s25 = sphi 0, %s27
      %s28 = sphi 0, %s25
      %s29 = sphi 0, %s28
      %s45 = sphi 0, %s29
      %s49 = sphi 0, %s49
      %s51 = sphi 0, %s49
      %s52 = sphi 0, %s51
      %s66 = sphi 0, %s52
      %s70 = sphi 0, %s70
      %s72 = sphi 0, %s70
      %s73 = sphi 0, %s72
      %s87 = sphi 0, %s73
      %s93 = sphi 0, %s95
      %s96 = sphi 0, %s93
      %s97 = sphi 0, %s96
      %s113 = sphi 0, %s97
    $region4: #{tpu_custom_call.1} parent=1 // loop_header_branch
      %18 = sbr.rel (%p16) target = $region8
    $region5: #{tpu_custom_call.1} parent=1 // loop_body
      %s20 = ssub.s32 %s15, 1
      %s21 = ssub.s32 %s15, 2
      %s22 = sadd.s32 %s15, 1
      %s23 = ssub.s32 %s15, %s22
      %p24 = scmp.eq.s32.totalorder %s23, 0
      %s26 = sadd.s32 %s25, 1
      %s27 = scalar_select %p24, %s25, %s26
      %p30 = pneg %p24
      %p31 = scmp.eq.s32.totalorder %s15, 1
      %p32 = por %p30, %p31
      %p33 = scmp.ne.s32.totalorder %s25, %s28
      %p34 = scmp.eq.s32.totalorder %s15, 0
      %p35 = por %p33, %p34
      %p36 = scmp.ne.s32.totalorder %s25, %s28
      %p37 = scmp.eq.s32.totalorder %s20, 1
      %p38 = por %p36, %p37
      %p39 = scmp.ne.s32.totalorder %s28, %s29
      %p40 = scmp.eq.s32.totalorder %s20, 0
      %p41 = por %p39, %p40
      %p42 = scmp.ne.s32.totalorder %s28, %s29
      %p43 = scmp.eq.s32.totalorder %s21, 1
      %p44 = por %p42, %p43
      %p46 = scmp.ne.s32.totalorder %s29, %s45
      %p47 = scmp.eq.s32.totalorder %s21, 0
      %p48 = por %p46, %p47
      %s50 = sadd.s32 %s49, 1
      %p53 = scmp.eq.s32.totalorder %s15, 1
      %p54 = scmp.ne.s32.totalorder %s49, %s51
      %p55 = scmp.eq.s32.totalorder %s15, 0
      %p56 = por %p54, %p55
      %p57 = scmp.ne.s32.totalorder %s49, %s51
      %p58 = scmp.eq.s32.totalorder %s20, 1
      %p59 = por %p57, %p58
      %p60 = scmp.ne.s32.totalorder %s51, %s52
      %p61 = scmp.eq.s32.totalorder %s20, 0
      %p62 = por %p60, %p61
      %p63 = scmp.ne.s32.totalorder %s51, %s52
      %p64 = scmp.eq.s32.totalorder %s21, 1
      %p65 = por %p63, %p64
      %p67 = scmp.ne.s32.totalorder %s52, %s66
      %p68 = scmp.eq.s32.totalorder %s21, 0
      %p69 = por %p67, %p68
      %s71 = sadd.s32 %s70, 1
      %p74 = scmp.eq.s32.totalorder %s15, 1
      %p75 = scmp.ne.s32.totalorder %s70, %s72
      %p76 = scmp.eq.s32.totalorder %s15, 0
      %p77 = por %p75, %p76
      %p78 = scmp.ne.s32.totalorder %s70, %s72
      %p79 = scmp.eq.s32.totalorder %s20, 1
      %p80 = por %p78, %p79
      %p81 = scmp.ne.s32.totalorder %s72, %s73
      %p82 = scmp.eq.s32.totalorder %s20, 0
      %p83 = por %p81, %p82
      %p84 = scmp.ne.s32.totalorder %s72, %s73
      %p85 = scmp.eq.s32.totalorder %s21, 1
      %p86 = por %p84, %p85
      %p88 = scmp.ne.s32.totalorder %s73, %s87
      %p89 = scmp.eq.s32.totalorder %s21, 0
      %p90 = por %p88, %p89
      %s91 = ssub.s32 %s15, %s22
      %p92 = scmp.eq.s32.totalorder %s91, 0
      %s94 = sadd.s32 %s93, 1
      %s95 = scalar_select %p92, %s93, %s94
      %p98 = pneg %p92
      %p99 = scmp.eq.s32.totalorder %s15, 1
      %p100 = por %p98, %p99
      %p101 = scmp.ne.s32.totalorder %s93, %s96
      %p102 = scmp.eq.s32.totalorder %s15, 0
      %p103 = por %p101, %p102
      %p104 = scmp.ne.s32.totalorder %s93, %s96
      %p105 = scmp.eq.s32.totalorder %s20, 1
      %p106 = por %p104, %p105
      %p107 = scmp.ne.s32.totalorder %s96, %s97
      %p108 = scmp.eq.s32.totalorder %s20, 0
      %p109 = por %p107, %p108
      %p110 = scmp.ne.s32.totalorder %s96, %s97
      %p111 = scmp.eq.s32.totalorder %s21, 1
      %p112 = por %p110, %p111
      %p114 = scmp.ne.s32.totalorder %s97, %s113
      %p115 = scmp.eq.s32.totalorder %s21, 0
      %p116 = por %p114, %p115
      %p117 = scmp.le.s32.totalorder 1, %s15
      %p118 = scmp.lt.s32.totalorder %s15, 3
      %p119 = pnand %p117, %p118
      %p120 = pneg %p119
      // Predicated region
      $region9: #{tpu_custom_call.1} parent=5 // pred_check
        _
      $region10: #{tpu_custom_call.1} parent=5 // pred_check_branch
        %122 = sbr.rel (%p119) target = $region12
      $region11: #{tpu_custom_call.1} parent=5 // pred_region
        %s123 = ssub.s32 %s15, 1
        // Predicated region
        $region13: #{tpu_custom_call.1} parent=11 // pred_check
          %p124 = pneg %p62
        $region14: #{tpu_custom_call.1} parent=11 // pred_check_branch
          %126 = sbr.rel (%p124) target = $region16
        $region15: #{tpu_custom_call.1} parent=11 // pred_region
          _
        $region16: #{tpu_custom_call.1} parent=11 // pred_fallthru
          _
        // Predicated region
        $region17: #{tpu_custom_call.1} parent=11 // pred_check
          %p127 = pneg %p83
        $region18: #{tpu_custom_call.1} parent=11 // pred_check_branch
          %129 = sbr.rel (%p127) target = $region20
        $region19: #{tpu_custom_call.1} parent=11 // pred_region
          _
        $region20: #{tpu_custom_call.1} parent=11 // pred_fallthru
          _
      $region12: #{tpu_custom_call.1} parent=5 // pred_fallthru
        _
      %p130 = scmp.lt.s32.totalorder %s15, 2
      // Predicated region
      $region21: #{tpu_custom_call.1} parent=5 // pred_check
        %p131 = pneg %p130
      $region22: #{tpu_custom_call.1} parent=5 // pred_check_branch
        %133 = sbr.rel (%p131) target = $region24
      $region23: #{tpu_custom_call.1} parent=5 // pred_region
        // Predicated region
        $region25: #{tpu_custom_call.1} parent=23 // pred_check
          %p134 = pneg %p35
        $region26: #{tpu_custom_call.1} parent=23 // pred_check_branch
          %136 = sbr.rel (%p134) target = $region28
        $region27: #{tpu_custom_call.1} parent=23 // pred_region
          %s137 = sand.u32 %s25, 1
          %s138 = scalar_lea.sflag [#allocation3], %s137
          %s139 = sand.u32 %s25, 1
          %s140 = smul.addr %s139, 256
          %s141 = scalar_lea.vmem [#allocation2], %s140
          %s142 = smul.u32 2, %s15
          %s144 = ssub.s32 4096, 4096
          %145 = vsyncadd %s138, %s144
          %s146 = smul.addr %s142, 16
          %s147 = smul.addr %s146, 128
          %s148 = scalar_lea.hbm %s0, %s147
          %s149 = sshll.u32 %s141, 4
          %s150 = int_to_ptr.vmem [resolvable:$true] %s149
          %155 = dma.hbm_to_vmem [thread:$0]  %s148, 4096, %s150, %s138, 256, 256, 16
        $region28: #{tpu_custom_call.1} parent=23 // pred_fallthru
          _
      $region24: #{tpu_custom_call.1} parent=5 // pred_fallthru
        _
      %p156 = scmp.le.s32.totalorder 1, %s15
      %p157 = scmp.lt.s32.totalorder %s15, 3
      %p158 = pnand %p156, %p157
      %p159 = pneg %p158
      // Predicated region
      $region29: #{tpu_custom_call.1} parent=5 // pred_check
        _
      $region30: #{tpu_custom_call.1} parent=5 // pred_check_branch
        %161 = sbr.rel (%p158) target = $region32
      $region31: #{tpu_custom_call.1} parent=5 // pred_region
        %s162 = ssub.s32 %s15, 1
        %s163 = sand.u32 %s28, 1
        %s164 = scalar_lea.sflag [#allocation3], %s163
        %s165 = sand.u32 %s28, 1
        %s166 = smul.addr %s165, 256
        %s167 = scalar_lea.vmem [#allocation2], %s166
        // Predicated region
        $region33: #{tpu_custom_call.1} parent=31 // pred_check
          %p168 = pneg %p41
        $region34: #{tpu_custom_call.1} parent=31 // pred_check_branch
          %170 = sbr.rel (%p168) target = $region36
        $region35: #{tpu_custom_call.1} parent=31 // pred_region
          %171 = dma.done %s164, 4096
        $region36: #{tpu_custom_call.1} parent=31 // pred_fallthru
          _
        %s172 = sand.u32 %s28, 1
        %s173 = scalar_lea.sflag [#allocation3], %s172
        %s174 = sand.u32 %s28, 1
        %s175 = smul.addr %s174, 256
        %s176 = scalar_lea.vmem [#allocation2], %s175
        %p177 = pneg %p41
        %p178 = pneg %p38
        %p179 = pneg %p62
        %p180 = pneg %p59
        %p181 = pneg %p83
        %p182 = pneg %p80
        %p183 = pneg %p109
        %p184 = pneg %p106
        %s185 = sand.u32 %s96, 1
        %s186 = scalar_lea.sflag [#allocation4], %s185
        %s187 = sand.u32 %s96, 1
        %s188 = smul.addr %s187, 256
        %s189 = scalar_lea.vmem [#allocation5], %s188
        %s190 = smul.u32 2, %s20
        %s191 = smul.u32 2, %s20
        %v192 = vld [vmem:[%s1] sm:$0xf]
        %v193 = vld [vmem:[%s2] sm:$0xff]
        %v194 = vld [vmem:[%s2 + $0x8] sm:$0xff]
        %v195 = vld [vmem:[%s2 + $0x10] sm:$0xff]
        %v196 = vld [vmem:[%s2 + $0x18] sm:$0xff]
        %v197 = vld [vmem:[%s2 + $0x20] sm:$0xff]
        %v198 = vld [vmem:[%s2 + $0x28] sm:$0xff]
        %v199 = vld [vmem:[%s2 + $0x30] sm:$0xff]
        %v200 = vld [vmem:[%s2 + $0x38] sm:$0xff]
        %v201 = vld [vmem:[%s167] sm:$0xff]
        %v202 = vld [vmem:[%s167 + $0x8] sm:$0xff]
        %v203 = vld [vmem:[%s167 + $0x10] sm:$0xff]
        %v204 = vld [vmem:[%s167 + $0x18] sm:$0xff]
        %v205 = vld [vmem:[%s167 + $0x20] sm:$0xff]
        %v206 = vld [vmem:[%s167 + $0x28] sm:$0xff]
        %v207 = vld [vmem:[%s167 + $0x30] sm:$0xff]
        %v208 = vld [vmem:[%s167 + $0x38] sm:$0xff]
        %v209 = vld [vmem:[%s167 + $0x40] sm:$0xff]
        %v210 = vld [vmem:[%s167 + $0x48] sm:$0xff]
        %v211 = vld [vmem:[%s167 + $0x50] sm:$0xff]
        %v212 = vld [vmem:[%s167 + $0x58] sm:$0xff]
        %v213 = vld [vmem:[%s167 + $0x60] sm:$0xff]
        %v214 = vld [vmem:[%s167 + $0x68] sm:$0xff]
        %v215 = vld [vmem:[%s167 + $0x70] sm:$0xff]
        %v216 = vld [vmem:[%s167 + $0x78] sm:$0xff]
        %217 = vmatprep.subr.mxu0 0.0
        %218 = vmatpush1.msra.mxu0 1.0
        %219 = vmatprep.subr.mxu0 0.0
        %220 = vmatpush1.msra.mxu0 1.0
        %221 = vmatprep.subr.mxu0 0.0
        %222 = vmatpush1.msra.mxu0 1.0
        %223 = vmatprep.subr.mxu0 0.0
        %224 = vmatpush1.msra.mxu0 1.0
        %225 = vmatprep.subr.mxu0 0.0
        %226 = vmatpush1.msra.mxu0 1.0
        %227 = vmatprep.subr.mxu0 0.0
        %228 = vmatpush1.msra.mxu0 1.0
        %229 = vmatprep.subr.mxu0 0.0
        %230 = vmatpush1.msra.mxu0 1.0
        %231 = vmatprep.subr.mxu0 0.0
        %232 = vmatpush1.msra.mxu0 1.0
        %233 = vmatprep.subr.mxu0 0.0
        %234 = vmatpush1.msra.mxu0 1.0
        %235 = vmatprep.subr.mxu0 0.0
        %236 = vmatpush1.msra.mxu0 1.0
        %237 = vmatprep.subr.mxu0 0.0
        %238 = vmatpush1.msra.mxu0 1.0
        %239 = vmatprep.subr.mxu0 0.0
        %240 = vmatpush1.msra.mxu0 1.0
        %241 = vmatprep.subr.mxu0 0.0
        %242 = vmatpush1.msra.mxu0 1.0
        %243 = vmatprep.subr.mxu0 0.0
        %244 = vmatpush1.msra.mxu0 1.0
        %245 = vmatprep.subr.mxu0 0.0
        %246 = vmatpush1.msra.mxu0 1.0
        %247 = vmatprep.subr.mxu0 0.0
        %248 = vmatpush1.msra.mxu0 1.0
        %249 = vmatprep.subr.mxu0 0.0
        %250 = vmatpush2.msra.mxu0 1.0
        %251 = vmatprep.subr.mxu0 0.0
        %252 = vmatpush2.msra.mxu0 1.0
        %253 = vmatprep.subr.mxu0 0.0
        %254 = vmatpush2.msra.mxu0 1.0
        %255 = vmatprep.subr.mxu0 0.0
        %256 = vmatpush2.msra.mxu0 1.0
        %257 = vmatprep.subr.mxu0 0.0
        %258 = vmatpush2.msra.mxu0 1.0
        %259 = vmatprep.subr.mxu0 0.0
        %260 = vmatpush2.msra.mxu0 1.0
        %261 = vmatprep.subr.mxu0 0.0
        %262 = vmatpush2.msra.mxu0 1.0
        %263 = vmatprep.subr.mxu0 0.0
        %264 = vmatpush2.msra.mxu0 1.0
        %265 = vmatprep.subr.mxu0 0.0
        %266 = vmatpush2.msra.mxu0 1.0
        %267 = vmatprep.subr.mxu0 0.0
        %268 = vmatpush2.msra.mxu0 1.0
        %269 = vmatprep.subr.mxu0 0.0
        %270 = vmatpush2.msra.mxu0 1.0
        %271 = vmatprep.subr.mxu0 0.0
        %272 = vmatpush2.msra.mxu0 1.0
        %273 = vmatprep.subr.mxu0 0.0
        %274 = vmatpush2.msra.mxu0 1.0
        %275 = vmatprep.subr.mxu0 0.0
        %276 = vmatpush2.msra.mxu0 1.0
        %277 = vmatprep.subr.mxu0 0.0
        %278 = vmatpush2.msra.mxu0 1.0
        %279 = vmatprep.subr.mxu0 0.0
        %280 = vmatpush2.msra.mxu0 1.0
        %281 = vmatprep.mubr.f32.mxu0 %v202
        %282 = vmatmul.mubr.f32.gmra.mxu0 %v201
        %v283 = vpop.f32.mrf.mxu0
        %v284 = vadd.f32 0.0, %v283
        %v285 = vpop.f32.mrf.mxu0
        %286 = vmatprep.mubr.f32.mxu0 %v204
        %287 = vmatmul.mubr.f32.gmra.mxu0 %v203
        %v288 = vpop.f32.mrf.mxu0
        %v289 = vadd.f32 0.0, %v288
        %v290 = vpop.f32.mrf.mxu0
        %291 = vmatprep.mubr.f32.mxu0 %v206
        %292 = vmatmul.mubr.f32.gmra.mxu0 %v205
        %v293 = vpop.f32.mrf.mxu0
        %v294 = vadd.f32 0.0, %v293
        %v295 = vpop.f32.mrf.mxu0
        %296 = vmatprep.mubr.f32.mxu0 %v208
        %297 = vmatmul.mubr.f32.gmra.mxu0 %v207
        %v298 = vpop.f32.mrf.mxu0
        %v299 = vadd.f32 0.0, %v298
        %v300 = vpop.f32.mrf.mxu0
        %301 = vmatprep.mubr.f32.mxu0 %v210
        %302 = vmatmul.mubr.f32.gmra.mxu0 %v209
        %v303 = vpop.f32.mrf.mxu0
        %v304 = vadd.f32 0.0, %v303
        %v305 = vpop.f32.mrf.mxu0
        %306 = vmatprep.mubr.f32.mxu0 %v212
        %307 = vmatmul.mubr.f32.gmra.mxu0 %v211
        %v308 = vpop.f32.mrf.mxu0
        %v309 = vadd.f32 0.0, %v308
        %v310 = vpop.f32.mrf.mxu0
        %311 = vmatprep.mubr.f32.mxu0 %v214
        %312 = vmatmul.mubr.f32.gmra.mxu0 %v213
        %v313 = vpop.f32.mrf.mxu0
        %v314 = vadd.f32 0.0, %v313
        %v315 = vpop.f32.mrf.mxu0
        %316 = vmatprep.mubr.f32.mxu0 %v216
        %317 = vmatmul.mubr.f32.gmra.mxu0 %v215
        %v318 = vpop.f32.mrf.mxu0
        %v319 = vadd.f32 0.0, %v318
        %v320 = vpop.f32.mrf.mxu0
        %321 = vdwg.mxu0
        %vm322 = vcmask 523264
        %v324 = vsel %vm322, %v192, 0
        %326 = vmatprep.subr.mxu0 0.0
        %327 = vmatpush1.msra.mxu0 0.0
        %328 = vmatprep.subr.mxu0 0.0
        %329 = vmatpush1.msra.mxu0 0.0
        %330 = vmatprep.subr.mxu0 0.0
        %331 = vmatpush1.msra.mxu0 0.0
        %332 = vmatprep.subr.mxu0 0.0
        %333 = vmatpush1.msra.mxu0 0.0
        %334 = vmatprep.subr.mxu0 0.0
        %335 = vmatpush1.msra.mxu0 0.0
        %336 = vmatprep.subr.mxu0 0.0
        %337 = vmatpush1.msra.mxu0 0.0
        %338 = vmatprep.subr.mxu0 0.0
        %339 = vmatpush1.msra.mxu0 0.0
        %340 = vmatprep.subr.mxu0 0.0
        %341 = vmatpush1.msra.mxu0 0.0
        %342 = vmatprep.subr.mxu0 0.0
        %343 = vmatpush1.msra.mxu0 %v319
        %344 = vmatprep.subr.mxu0 0.0
        %345 = vmatpush1.msra.mxu0 %v314
        %346 = vmatprep.subr.mxu0 0.0
        %347 = vmatpush1.msra.mxu0 %v309
        %348 = vmatprep.subr.mxu0 0.0
        %349 = vmatpush1.msra.mxu0 %v304
        %350 = vmatprep.subr.mxu0 0.0
        %351 = vmatpush1.msra.mxu0 %v299
        %352 = vmatprep.subr.mxu0 0.0
        %353 = vmatpush1.msra.mxu0 %v294
        %354 = vmatprep.subr.mxu0 0.0
        %355 = vmatpush1.msra.mxu0 %v289
        %356 = vmatprep.subr.mxu0 0.0
        %357 = vmatpush1.msra.mxu0 %v284
        %358 = vmatprep.subr.mxu0 0.0
        %359 = vmatpush2.msra.mxu0 0.0
        %360 = vmatprep.subr.mxu0 0.0
        %361 = vmatpush2.msra.mxu0 0.0
        %362 = vmatprep.subr.mxu0 0.0
        %363 = vmatpush2.msra.mxu0 0.0
        %364 = vmatprep.subr.mxu0 0.0
        %365 = vmatpush2.msra.mxu0 0.0
        %366 = vmatprep.subr.mxu0 0.0
        %367 = vmatpush2.msra.mxu0 0.0
        %368 = vmatprep.subr.mxu0 0.0
        %369 = vmatpush2.msra.mxu0 0.0
        %370 = vmatprep.subr.mxu0 0.0
        %371 = vmatpush2.msra.mxu0 0.0
        %372 = vmatprep.subr.mxu0 0.0
        %373 = vmatpush2.msra.mxu0 0.0
        %374 = vmatprep.subr.mxu0 0.0
        %375 = vmatpush2.msra.mxu0 0.0
        %376 = vmatprep.subr.mxu0 0.0
        %377 = vmatpush2.msra.mxu0 0.0
        %378 = vmatprep.subr.mxu0 0.0
        %379 = vmatpush2.msra.mxu0 0.0
        %380 = vmatprep.subr.mxu0 0.0
        %381 = vmatpush2.msra.mxu0 0.0
        %382 = vmatprep.subr.mxu0 0.0
        %383 = vmatpush2.msra.mxu0 0.0
        %384 = vmatprep.subr.mxu0 0.0
        %385 = vmatpush2.msra.mxu0 0.0
        %386 = vmatprep.subr.mxu0 0.0
        %387 = vmatpush2.msra.mxu0 0.0
        %388 = vmatprep.subr.mxu0 0.0
        %389 = vmatpush2.msra.mxu0 0.0
        %390 = vmatprep.mubr.f32.mxu0 0.0
        %391 = vmatmul.mubr.f32.gmra.mxu0 %v324
        %v392 = vpop.f32.mrf.mxu0
        %v393 = vadd.f32 0.0, %v392
        %v394 = vpop.f32.mrf.mxu0
        %395 = vdwg.mxu0
        %v396 = vmax.f32 %v393, 0.0
        %vm397 = vcmask 31744
        %v399 = vsel %vm397, %v193, 0
        %v402 = vsel %vm397, %v194, 0
        %v405 = vsel %vm397, %v195, 0
        %v408 = vsel %vm397, %v196, 0
        %v411 = vsel %vm397, %v197, 0
        %v414 = vsel %vm397, %v198, 0
        %v417 = vsel %vm397, %v199, 0
        %v420 = vsel %vm397, %v200, 0
        %vm422 = vcmask 1043456
        %v424 = vsel %vm422, %v396, 0
        %426 = vmatprep.subr.mxu0 0.0
        %427 = vmatpush1.msra.mxu0 0.0
        %428 = vmatprep.subr.mxu0 0.0
        %429 = vmatpush1.msra.mxu0 0.0
        %430 = vmatprep.subr.mxu0 0.0
        %431 = vmatpush1.msra.mxu0 0.0
        %432 = vmatprep.subr.mxu0 0.0
        %433 = vmatpush1.msra.mxu0 0.0
        %434 = vmatprep.subr.mxu0 0.0
        %435 = vmatpush1.msra.mxu0 0.0
        %436 = vmatprep.subr.mxu0 0.0
        %437 = vmatpush1.msra.mxu0 0.0
        %438 = vmatprep.subr.mxu0 0.0
        %439 = vmatpush1.msra.mxu0 0.0
        %440 = vmatprep.subr.mxu0 0.0
        %441 = vmatpush1.msra.mxu0 0.0
        %442 = vmatprep.subr.mxu0 0.0
        %443 = vmatpush1.msra.mxu0 0.0
        %444 = vmatprep.subr.mxu0 0.0
        %445 = vmatpush1.msra.mxu0 0.0
        %446 = vmatprep.subr.mxu0 0.0
        %447 = vmatpush1.msra.mxu0 0.0
        %448 = vmatprep.subr.mxu0 0.0
        %449 = vmatpush1.msra.mxu0 0.0
        %450 = vmatprep.subr.mxu0 0.0
        %451 = vmatpush1.msra.mxu0 0.0
        %452 = vmatprep.subr.mxu0 0.0
        %453 = vmatpush1.msra.mxu0 0.0
        %454 = vmatprep.subr.mxu0 0.0
        %455 = vmatpush1.msra.mxu0 0.0
        %456 = vmatprep.subr.mxu0 0.0
        %457 = vmatpush1.msra.mxu0 %v424
        %458 = vmatprep.subr.mxu0 0.0
        %459 = vmatpush2.msra.mxu0 0.0
        %460 = vmatprep.subr.mxu0 0.0
        %461 = vmatpush2.msra.mxu0 0.0
        %462 = vmatprep.subr.mxu0 0.0
        %463 = vmatpush2.msra.mxu0 0.0
        %464 = vmatprep.subr.mxu0 0.0
        %465 = vmatpush2.msra.mxu0 0.0
        %466 = vmatprep.subr.mxu0 0.0
        %467 = vmatpush2.msra.mxu0 0.0
        %468 = vmatprep.subr.mxu0 0.0
        %469 = vmatpush2.msra.mxu0 0.0
        %470 = vmatprep.subr.mxu0 0.0
        %471 = vmatpush2.msra.mxu0 0.0
        %472 = vmatprep.subr.mxu0 0.0
        %473 = vmatpush2.msra.mxu0 0.0
        %474 = vmatprep.subr.mxu0 0.0
        %475 = vmatpush2.msra.mxu0 0.0
        %476 = vmatprep.subr.mxu0 0.0
        %477 = vmatpush2.msra.mxu0 0.0
        %478 = vmatprep.subr.mxu0 0.0
        %479 = vmatpush2.msra.mxu0 0.0
        %480 = vmatprep.subr.mxu0 0.0
        %481 = vmatpush2.msra.mxu0 0.0
        %482 = vmatprep.subr.mxu0 0.0
        %483 = vmatpush2.msra.mxu0 0.0
        %484 = vmatprep.subr.mxu0 0.0
        %485 = vmatpush2.msra.mxu0 0.0
        %486 = vmatprep.subr.mxu0 0.0
        %487 = vmatpush2.msra.mxu0 0.0
        %488 = vmatprep.subr.mxu0 0.0
        %489 = vmatpush2.msra.mxu0 0.0
        %490 = vmatprep.mubr.f32.mxu0 0.0
        %491 = vmatmul.mubr.f32.gmra.mxu0 %v399
        %v492 = vpop.f32.mrf.mxu0
        %v493 = vadd.f32 0.0, %v492
        %v494 = vpop.f32.mrf.mxu0
        %495 = vmatprep.mubr.f32.mxu0 0.0
        %496 = vmatmul.mubr.f32.gmra.mxu0 %v402
        %v497 = vpop.f32.mrf.mxu0
        %v498 = vadd.f32 0.0, %v497
        %v499 = vpop.f32.mrf.mxu0
        %500 = vmatprep.mubr.f32.mxu0 0.0
        %501 = vmatmul.mubr.f32.gmra.mxu0 %v405
        %v502 = vpop.f32.mrf.mxu0
        %v503 = vadd.f32 0.0, %v502
        %v504 = vpop.f32.mrf.mxu0
        %505 = vmatprep.mubr.f32.mxu0 0.0
        %506 = vmatmul.mubr.f32.gmra.mxu0 %v408
        %v507 = vpop.f32.mrf.mxu0
        %v508 = vadd.f32 0.0, %v507
        %v509 = vpop.f32.mrf.mxu0
        %510 = vmatprep.mubr.f32.mxu0 0.0
        %511 = vmatmul.mubr.f32.gmra.mxu0 %v411
        %v512 = vpop.f32.mrf.mxu0
        %v513 = vadd.f32 0.0, %v512
        %v514 = vpop.f32.mrf.mxu0
        %515 = vmatprep.mubr.f32.mxu0 0.0
        %516 = vmatmul.mubr.f32.gmra.mxu0 %v414
        %v517 = vpop.f32.mrf.mxu0
        %v518 = vadd.f32 0.0, %v517
        %v519 = vpop.f32.mrf.mxu0
        %520 = vmatprep.mubr.f32.mxu0 0.0
        %521 = vmatmul.mubr.f32.gmra.mxu0 %v417
        %v522 = vpop.f32.mrf.mxu0
        %v523 = vadd.f32 0.0, %v522
        %v524 = vpop.f32.mrf.mxu0
        %525 = vmatprep.mubr.f32.mxu0 0.0
        %526 = vmatmul.mubr.f32.gmra.mxu0 %v420
        %v527 = vpop.f32.mrf.mxu0
        %v528 = vadd.f32 0.0, %v527
        %v529 = vpop.f32.mrf.mxu0
        %530 = vdwg.mxu0
        %v531 = vxor.u32 %v493, 2147483648
        %v532 = vxor.u32 %v498, 2147483648
        %v533 = vxor.u32 %v503, 2147483648
        %v534 = vxor.u32 %v508, 2147483648
        %v535 = vxor.u32 %v513, 2147483648
        %v536 = vxor.u32 %v518, 2147483648
        %v537 = vxor.u32 %v523, 2147483648
        %v538 = vxor.u32 %v528, 2147483648
        %v539 = vmul.f32 %v531, 1.442695
        %v540 = vpow.pop %v539
        %v541 = vmul.f32 %v532, 1.442695
        %v542 = vpow.pop %v541
        %v543 = vmul.f32 %v533, 1.442695
        %v544 = vpow.pop %v543
        %v545 = vmul.f32 %v534, 1.442695
        %v546 = vpow.pop %v545
        %v547 = vmul.f32 %v535, 1.442695
        %v548 = vpow.pop %v547
        %v549 = vmul.f32 %v536, 1.442695
        %v550 = vpow.pop %v549
        %v551 = vmul.f32 %v537, 1.442695
        %v552 = vpow.pop %v551
        %v553 = vmul.f32 %v538, 1.442695
        %v554 = vpow.pop %v553
        %v555 = vadd.f32 %v540, 1.0
        %v556 = vadd.f32 %v542, 1.0
        %v557 = vadd.f32 %v544, 1.0
        %v558 = vadd.f32 %v546, 1.0
        %v559 = vadd.f32 %v548, 1.0
        %v560 = vadd.f32 %v550, 1.0
        %v561 = vadd.f32 %v552, 1.0
        %v562 = vadd.f32 %v554, 1.0
        %v563 = vrcp.pop %v555
        %v564 = vmul.f32 1.0, %v563
        %v565 = vrcp.pop %v556
        %v566 = vmul.f32 1.0, %v565
        %v567 = vrcp.pop %v557
        %v568 = vmul.f32 1.0, %v567
        %v569 = vrcp.pop %v558
        %v570 = vmul.f32 1.0, %v569
        %v571 = vrcp.pop %v559
        %v572 = vmul.f32 1.0, %v571
        %v573 = vrcp.pop %v560
        %v574 = vmul.f32 1.0, %v573
        %v575 = vrcp.pop %v561
        %v576 = vmul.f32 1.0, %v575
        %v577 = vrcp.pop %v562
        %v578 = vmul.f32 1.0, %v577
        %580 = vset.pattern.permute.xlu0 0
        %581 = vperm.xlu0 %580, %v564
        %v582 = vpop.permute.xlu0 %581
        %585 = vset.pattern.permute.xlu0 0
        %586 = vperm.xlu0 %585, %v566
        %v587 = vpop.permute.xlu0 %586
        %590 = vset.pattern.permute.xlu0 0
        %591 = vperm.xlu0 %590, %v568
        %v592 = vpop.permute.xlu0 %591
        %595 = vset.pattern.permute.xlu0 0
        %596 = vperm.xlu0 %595, %v570
        %v597 = vpop.permute.xlu0 %596
        %600 = vset.pattern.permute.xlu0 0
        %601 = vperm.xlu0 %600, %v572
        %v602 = vpop.permute.xlu0 %601
        %605 = vset.pattern.permute.xlu0 0
        %606 = vperm.xlu0 %605, %v574
        %v607 = vpop.permute.xlu0 %606
        %610 = vset.pattern.permute.xlu0 0
        %611 = vperm.xlu0 %610, %v576
        %v612 = vpop.permute.xlu0 %611
        %615 = vset.pattern.permute.xlu0 0
        %616 = vperm.xlu0 %615, %v578
        %v617 = vpop.permute.xlu0 %616
        %v619 = vmul.f32 %v201, %v582
        %v620 = vmul.f32 %v202, %v582
        %v621 = vmul.f32 %v203, %v587
        %v622 = vmul.f32 %v204, %v587
        %v623 = vmul.f32 %v205, %v592
        %v624 = vmul.f32 %v206, %v592
        %v625 = vmul.f32 %v207, %v597
        %v626 = vmul.f32 %v208, %v597
        %v627 = vmul.f32 %v209, %v602
        %v628 = vmul.f32 %v210, %v602
        %v629 = vmul.f32 %v211, %v607
        %v630 = vmul.f32 %v212, %v607
        %v631 = vmul.f32 %v213, %v612
        %v632 = vmul.f32 %v214, %v612
        %v633 = vmul.f32 %v215, %v617
        %v634 = vmul.f32 %v216, %v617
        %635 = vst [vmem:[%s189] sm:$0xff] %v619
        %636 = vst [vmem:[%s189 + $0x8] sm:$0xff] %v620
        %637 = vst [vmem:[%s189 + $0x10] sm:$0xff] %v621
        %638 = vst [vmem:[%s189 + $0x18] sm:$0xff] %v622
        %639 = vst [vmem:[%s189 + $0x20] sm:$0xff] %v623
        %640 = vst [vmem:[%s189 + $0x28] sm:$0xff] %v624
        %641 = vst [vmem:[%s189 + $0x30] sm:$0xff] %v625
        %642 = vst [vmem:[%s189 + $0x38] sm:$0xff] %v626
        %643 = vst [vmem:[%s189 + $0x40] sm:$0xff] %v627
        %644 = vst [vmem:[%s189 + $0x48] sm:$0xff] %v628
        %645 = vst [vmem:[%s189 + $0x50] sm:$0xff] %v629
        %646 = vst [vmem:[%s189 + $0x58] sm:$0xff] %v630
        %647 = vst [vmem:[%s189 + $0x60] sm:$0xff] %v631
        %648 = vst [vmem:[%s189 + $0x68] sm:$0xff] %v632
        %649 = vst [vmem:[%s189 + $0x70] sm:$0xff] %v633
        %650 = vst [vmem:[%s189 + $0x78] sm:$0xff] %v634
        %s651 = scalar_lea.vmem %s167, 128 [#allocation2]
        %v652 = vld [vmem:[%s651] sm:$0xff]
        %v653 = vld [vmem:[%s651 + $0x8] sm:$0xff]
        %v654 = vld [vmem:[%s651 + $0x10] sm:$0xff]
        %v655 = vld [vmem:[%s651 + $0x18] sm:$0xff]
        %v656 = vld [vmem:[%s651 + $0x20] sm:$0xff]
        %v657 = vld [vmem:[%s651 + $0x28] sm:$0xff]
        %v658 = vld [vmem:[%s651 + $0x30] sm:$0xff]
        %v659 = vld [vmem:[%s651 + $0x38] sm:$0xff]
        %v660 = vld [vmem:[%s651 + $0x40] sm:$0xff]
        %v661 = vld [vmem:[%s651 + $0x48] sm:$0xff]
        %v662 = vld [vmem:[%s651 + $0x50] sm:$0xff]
        %v663 = vld [vmem:[%s651 + $0x58] sm:$0xff]
        %v664 = vld [vmem:[%s651 + $0x60] sm:$0xff]
        %v665 = vld [vmem:[%s651 + $0x68] sm:$0xff]
        %v666 = vld [vmem:[%s651 + $0x70] sm:$0xff]
        %v667 = vld [vmem:[%s651 + $0x78] sm:$0xff]
        %668 = vmatprep.subr.mxu0 0.0
        %669 = vmatpush1.msra.mxu0 1.0
        %670 = vmatprep.subr.mxu0 0.0
        %671 = vmatpush1.msra.mxu0 1.0
        %672 = vmatprep.subr.mxu0 0.0
        %673 = vmatpush1.msra.mxu0 1.0
        %674 = vmatprep.subr.mxu0 0.0
        %675 = vmatpush1.msra.mxu0 1.0
        %676 = vmatprep.subr.mxu0 0.0
        %677 = vmatpush1.msra.mxu0 1.0
        %678 = vmatprep.subr.mxu0 0.0
        %679 = vmatpush1.msra.mxu0 1.0
        %680 = vmatprep.subr.mxu0 0.0
        %681 = vmatpush1.msra.mxu0 1.0
        %682 = vmatprep.subr.mxu0 0.0
        %683 = vmatpush1.msra.mxu0 1.0
        %684 = vmatprep.subr.mxu0 0.0
        %685 = vmatpush1.msra.mxu0 1.0
        %686 = vmatprep.subr.mxu0 0.0
        %687 = vmatpush1.msra.mxu0 1.0
        %688 = vmatprep.subr.mxu0 0.0
        %689 = vmatpush1.msra.mxu0 1.0
        %690 = vmatprep.subr.mxu0 0.0
        %691 = vmatpush1.msra.mxu0 1.0
        %692 = vmatprep.subr.mxu0 0.0
        %693 = vmatpush1.msra.mxu0 1.0
        %694 = vmatprep.subr.mxu0 0.0
        %695 = vmatpush1.msra.mxu0 1.0
        %696 = vmatprep.subr.mxu0 0.0
        %697 = vmatpush1.msra.mxu0 1.0
        %698 = vmatprep.subr.mxu0 0.0
        %699 = vmatpush1.msra.mxu0 1.0
        %700 = vmatprep.subr.mxu0 0.0
        %701 = vmatpush2.msra.mxu0 1.0
        %702 = vmatprep.subr.mxu0 0.0
        %703 = vmatpush2.msra.mxu0 1.0
        %704 = vmatprep.subr.mxu0 0.0
        %705 = vmatpush2.msra.mxu0 1.0
        %706 = vmatprep.subr.mxu0 0.0
        %707 = vmatpush2.msra.mxu0 1.0
        %708 = vmatprep.subr.mxu0 0.0
        %709 = vmatpush2.msra.mxu0 1.0
        %710 = vmatprep.subr.mxu0 0.0
        %711 = vmatpush2.msra.mxu0 1.0
        %712 = vmatprep.subr.mxu0 0.0
        %713 = vmatpush2.msra.mxu0 1.0
        %714 = vmatprep.subr.mxu0 0.0
        %715 = vmatpush2.msra.mxu0 1.0
        %716 = vmatprep.subr.mxu0 0.0
        %717 = vmatpush2.msra.mxu0 1.0
        %718 = vmatprep.subr.mxu0 0.0
        %719 = vmatpush2.msra.mxu0 1.0
        %720 = vmatprep.subr.mxu0 0.0
        %721 = vmatpush2.msra.mxu0 1.0
        %722 = vmatprep.subr.mxu0 0.0
        %723 = vmatpush2.msra.mxu0 1.0
        %724 = vmatprep.subr.mxu0 0.0
        %725 = vmatpush2.msra.mxu0 1.0
        %726 = vmatprep.subr.mxu0 0.0
        %727 = vmatpush2.msra.mxu0 1.0
        %728 = vmatprep.subr.mxu0 0.0
        %729 = vmatpush2.msra.mxu0 1.0
        %730 = vmatprep.subr.mxu0 0.0
        %731 = vmatpush2.msra.mxu0 1.0
        %732 = vmatprep.mubr.f32.mxu0 %v653
        %733 = vmatmul.mubr.f32.gmra.mxu0 %v652
        %v734 = vpop.f32.mrf.mxu0
        %v735 = vadd.f32 0.0, %v734
        %v736 = vpop.f32.mrf.mxu0
        %737 = vmatprep.mubr.f32.mxu0 %v655
        %738 = vmatmul.mubr.f32.gmra.mxu0 %v654
        %v739 = vpop.f32.mrf.mxu0
        %v740 = vadd.f32 0.0, %v739
        %v741 = vpop.f32.mrf.mxu0
        %742 = vmatprep.mubr.f32.mxu0 %v657
        %743 = vmatmul.mubr.f32.gmra.mxu0 %v656
        %v744 = vpop.f32.mrf.mxu0
        %v745 = vadd.f32 0.0, %v744
        %v746 = vpop.f32.mrf.mxu0
        %747 = vmatprep.mubr.f32.mxu0 %v659
        %748 = vmatmul.mubr.f32.gmra.mxu0 %v658
        %v749 = vpop.f32.mrf.mxu0
        %v750 = vadd.f32 0.0, %v749
        %v751 = vpop.f32.mrf.mxu0
        %752 = vmatprep.mubr.f32.mxu0 %v661
        %753 = vmatmul.mubr.f32.gmra.mxu0 %v660
        %v754 = vpop.f32.mrf.mxu0
        %v755 = vadd.f32 0.0, %v754
        %v756 = vpop.f32.mrf.mxu0
        %757 = vmatprep.mubr.f32.mxu0 %v663
        %758 = vmatmul.mubr.f32.gmra.mxu0 %v662
        %v759 = vpop.f32.mrf.mxu0
        %v760 = vadd.f32 0.0, %v759
        %v761 = vpop.f32.mrf.mxu0
        %762 = vmatprep.mubr.f32.mxu0 %v665
        %763 = vmatmul.mubr.f32.gmra.mxu0 %v664
        %v764 = vpop.f32.mrf.mxu0
        %v765 = vadd.f32 0.0, %v764
        %v766 = vpop.f32.mrf.mxu0
        %767 = vmatprep.mubr.f32.mxu0 %v667
        %768 = vmatmul.mubr.f32.gmra.mxu0 %v666
        %v769 = vpop.f32.mrf.mxu0
        %v770 = vadd.f32 0.0, %v769
        %v771 = vpop.f32.mrf.mxu0
        %772 = vdwg.mxu0
        %773 = vmatprep.subr.mxu0 0.0
        %774 = vmatpush1.msra.mxu0 0.0
        %775 = vmatprep.subr.mxu0 0.0
        %776 = vmatpush1.msra.mxu0 0.0
        %777 = vmatprep.subr.mxu0 0.0
        %778 = vmatpush1.msra.mxu0 0.0
        %779 = vmatprep.subr.mxu0 0.0
        %780 = vmatpush1.msra.mxu0 0.0
        %781 = vmatprep.subr.mxu0 0.0
        %782 = vmatpush1.msra.mxu0 0.0
        %783 = vmatprep.subr.mxu0 0.0
        %784 = vmatpush1.msra.mxu0 0.0
        %785 = vmatprep.subr.mxu0 0.0
        %786 = vmatpush1.msra.mxu0 0.0
        %787 = vmatprep.subr.mxu0 0.0
        %788 = vmatpush1.msra.mxu0 0.0
        %789 = vmatprep.subr.mxu0 0.0
        %790 = vmatpush1.msra.mxu0 %v770
        %791 = vmatprep.subr.mxu0 0.0
        %792 = vmatpush1.msra.mxu0 %v765
        %793 = vmatprep.subr.mxu0 0.0
        %794 = vmatpush1.msra.mxu0 %v760
        %795 = vmatprep.subr.mxu0 0.0
        %796 = vmatpush1.msra.mxu0 %v755
        %797 = vmatprep.subr.mxu0 0.0
        %798 = vmatpush1.msra.mxu0 %v750
        %799 = vmatprep.subr.mxu0 0.0
        %800 = vmatpush1.msra.mxu0 %v745
        %801 = vmatprep.subr.mxu0 0.0
        %802 = vmatpush1.msra.mxu0 %v740
        %803 = vmatprep.subr.mxu0 0.0
        %804 = vmatpush1.msra.mxu0 %v735
        %805 = vmatprep.subr.mxu0 0.0
        %806 = vmatpush2.msra.mxu0 0.0
        %807 = vmatprep.subr.mxu0 0.0
        %808 = vmatpush2.msra.mxu0 0.0
        %809 = vmatprep.subr.mxu0 0.0
        %810 = vmatpush2.msra.mxu0 0.0
        %811 = vmatprep.subr.mxu0 0.0
        %812 = vmatpush2.msra.mxu0 0.0
        %813 = vmatprep.subr.mxu0 0.0
        %814 = vmatpush2.msra.mxu0 0.0
        %815 = vmatprep.subr.mxu0 0.0
        %816 = vmatpush2.msra.mxu0 0.0
        %817 = vmatprep.subr.mxu0 0.0
        %818 = vmatpush2.msra.mxu0 0.0
        %819 = vmatprep.subr.mxu0 0.0
        %820 = vmatpush2.msra.mxu0 0.0
        %821 = vmatprep.subr.mxu0 0.0
        %822 = vmatpush2.msra.mxu0 0.0
        %823 = vmatprep.subr.mxu0 0.0
        %824 = vmatpush2.msra.mxu0 0.0
        %825 = vmatprep.subr.mxu0 0.0
        %826 = vmatpush2.msra.mxu0 0.0
        %827 = vmatprep.subr.mxu0 0.0
        %828 = vmatpush2.msra.mxu0 0.0
        %829 = vmatprep.subr.mxu0 0.0
        %830 = vmatpush2.msra.mxu0 0.0
        %831 = vmatprep.subr.mxu0 0.0
        %832 = vmatpush2.msra.mxu0 0.0
        %833 = vmatprep.subr.mxu0 0.0
        %834 = vmatpush2.msra.mxu0 0.0
        %835 = vmatprep.subr.mxu0 0.0
        %836 = vmatpush2.msra.mxu0 0.0
        %837 = vmatprep.mubr.f32.mxu0 0.0
        %838 = vmatmul.mubr.f32.gmra.mxu0 %v324
        %v839 = vpop.f32.mrf.mxu0
        %v840 = vadd.f32 0.0, %v839
        %v841 = vpop.f32.mrf.mxu0
        %842 = vdwg.mxu0
        %v843 = vmax.f32 %v840, 0.0
        %v845 = vsel %vm422, %v843, 0
        %847 = vmatprep.subr.mxu0 0.0
        %848 = vmatpush1.msra.mxu0 0.0
        %849 = vmatprep.subr.mxu0 0.0
        %850 = vmatpush1.msra.mxu0 0.0
        %851 = vmatprep.subr.mxu0 0.0
        %852 = vmatpush1.msra.mxu0 0.0
        %853 = vmatprep.subr.mxu0 0.0
        %854 = vmatpush1.msra.mxu0 0.0
        %855 = vmatprep.subr.mxu0 0.0
        %856 = vmatpush1.msra.mxu0 0.0
        %857 = vmatprep.subr.mxu0 0.0
        %858 = vmatpush1.msra.mxu0 0.0
        %859 = vmatprep.subr.mxu0 0.0
        %860 = vmatpush1.msra.mxu0 0.0
        %861 = vmatprep.subr.mxu0 0.0
        %862 = vmatpush1.msra.mxu0 0.0
        %863 = vmatprep.subr.mxu0 0.0
        %864 = vmatpush1.msra.mxu0 0.0
        %865 = vmatprep.subr.mxu0 0.0
        %866 = vmatpush1.msra.mxu0 0.0
        %867 = vmatprep.subr.mxu0 0.0
        %868 = vmatpush1.msra.mxu0 0.0
        %869 = vmatprep.subr.mxu0 0.0
        %870 = vmatpush1.msra.mxu0 0.0
        %871 = vmatprep.subr.mxu0 0.0
        %872 = vmatpush1.msra.mxu0 0.0
        %873 = vmatprep.subr.mxu0 0.0
        %874 = vmatpush1.msra.mxu0 0.0
        %875 = vmatprep.subr.mxu0 0.0
        %876 = vmatpush1.msra.mxu0 0.0
        %877 = vmatprep.subr.mxu0 0.0
        %878 = vmatpush1.msra.mxu0 %v845
        %879 = vmatprep.subr.mxu0 0.0
        %880 = vmatpush2.msra.mxu0 0.0
        %881 = vmatprep.subr.mxu0 0.0
        %882 = vmatpush2.msra.mxu0 0.0
        %883 = vmatprep.subr.mxu0 0.0
        %884 = vmatpush2.msra.mxu0 0.0
        %885 = vmatprep.subr.mxu0 0.0
        %886 = vmatpush2.msra.mxu0 0.0
        %887 = vmatprep.subr.mxu0 0.0
        %888 = vmatpush2.msra.mxu0 0.0
        %889 = vmatprep.subr.mxu0 0.0
        %890 = vmatpush2.msra.mxu0 0.0
        %891 = vmatprep.subr.mxu0 0.0
        %892 = vmatpush2.msra.mxu0 0.0
        %893 = vmatprep.subr.mxu0 0.0
        %894 = vmatpush2.msra.mxu0 0.0
        %895 = vmatprep.subr.mxu0 0.0
        %896 = vmatpush2.msra.mxu0 0.0
        %897 = vmatprep.subr.mxu0 0.0
        %898 = vmatpush2.msra.mxu0 0.0
        %899 = vmatprep.subr.mxu0 0.0
        %900 = vmatpush2.msra.mxu0 0.0
        %901 = vmatprep.subr.mxu0 0.0
        %902 = vmatpush2.msra.mxu0 0.0
        %903 = vmatprep.subr.mxu0 0.0
        %904 = vmatpush2.msra.mxu0 0.0
        %905 = vmatprep.subr.mxu0 0.0
        %906 = vmatpush2.msra.mxu0 0.0
        %907 = vmatprep.subr.mxu0 0.0
        %908 = vmatpush2.msra.mxu0 0.0
        %909 = vmatprep.subr.mxu0 0.0
        %910 = vmatpush2.msra.mxu0 0.0
        %911 = vmatprep.mubr.f32.mxu0 0.0
        %912 = vmatmul.mubr.f32.gmra.mxu0 %v399
        %v913 = vpop.f32.mrf.mxu0
        %v914 = vadd.f32 0.0, %v913
        %v915 = vpop.f32.mrf.mxu0
        %916 = vmatprep.mubr.f32.mxu0 0.0
        %917 = vmatmul.mubr.f32.gmra.mxu0 %v402
        %v918 = vpop.f32.mrf.mxu0
        %v919 = vadd.f32 0.0, %v918
        %v920 = vpop.f32.mrf.mxu0
        %921 = vmatprep.mubr.f32.mxu0 0.0
        %922 = vmatmul.mubr.f32.gmra.mxu0 %v405
        %v923 = vpop.f32.mrf.mxu0
        %v924 = vadd.f32 0.0, %v923
        %v925 = vpop.f32.mrf.mxu0
        %926 = vmatprep.mubr.f32.mxu0 0.0
        %927 = vmatmul.mubr.f32.gmra.mxu0 %v408
        %v928 = vpop.f32.mrf.mxu0
        %v929 = vadd.f32 0.0, %v928
        %v930 = vpop.f32.mrf.mxu0
        %931 = vmatprep.mubr.f32.mxu0 0.0
        %932 = vmatmul.mubr.f32.gmra.mxu0 %v411
        %v933 = vpop.f32.mrf.mxu0
        %v934 = vadd.f32 0.0, %v933
        %v935 = vpop.f32.mrf.mxu0
        %936 = vmatprep.mubr.f32.mxu0 0.0
        %937 = vmatmul.mubr.f32.gmra.mxu0 %v414
        %v938 = vpop.f32.mrf.mxu0
        %v939 = vadd.f32 0.0, %v938
        %v940 = vpop.f32.mrf.mxu0
        %941 = vmatprep.mubr.f32.mxu0 0.0
        %942 = vmatmul.mubr.f32.gmra.mxu0 %v417
        %v943 = vpop.f32.mrf.mxu0
        %v944 = vadd.f32 0.0, %v943
        %v945 = vpop.f32.mrf.mxu0
        %946 = vmatprep.mubr.f32.mxu0 0.0
        %947 = vmatmul.mubr.f32.gmra.mxu0 %v420
        %v948 = vpop.f32.mrf.mxu0
        %v949 = vadd.f32 0.0, %v948
        %v950 = vpop.f32.mrf.mxu0
        %951 = vdwg.mxu0
        %v952 = vxor.u32 %v914, 2147483648
        %v953 = vxor.u32 %v919, 2147483648
        %v954 = vxor.u32 %v924, 2147483648
        %v955 = vxor.u32 %v929, 2147483648
        %v956 = vxor.u32 %v934, 2147483648
        %v957 = vxor.u32 %v939, 2147483648
        %v958 = vxor.u32 %v944, 2147483648
        %v959 = vxor.u32 %v949, 2147483648
        %v960 = vmul.f32 %v952, 1.442695
        %v961 = vpow.pop %v960
        %v962 = vmul.f32 %v953, 1.442695
        %v963 = vpow.pop %v962
        %v964 = vmul.f32 %v954, 1.442695
        %v965 = vpow.pop %v964
        %v966 = vmul.f32 %v955, 1.442695
        %v967 = vpow.pop %v966
        %v968 = vmul.f32 %v956, 1.442695
        %v969 = vpow.pop %v968
        %v970 = vmul.f32 %v957, 1.442695
        %v971 = vpow.pop %v970
        %v972 = vmul.f32 %v958, 1.442695
        %v973 = vpow.pop %v972
        %v974 = vmul.f32 %v959, 1.442695
        %v975 = vpow.pop %v974
        %v976 = vadd.f32 %v961, 1.0
        %v977 = vadd.f32 %v963, 1.0
        %v978 = vadd.f32 %v965, 1.0
        %v979 = vadd.f32 %v967, 1.0
        %v980 = vadd.f32 %v969, 1.0
        %v981 = vadd.f32 %v971, 1.0
        %v982 = vadd.f32 %v973, 1.0
        %v983 = vadd.f32 %v975, 1.0
        %v984 = vrcp.pop %v976
        %v985 = vmul.f32 1.0, %v984
        %v986 = vrcp.pop %v977
        %v987 = vmul.f32 1.0, %v986
        %v988 = vrcp.pop %v978
        %v989 = vmul.f32 1.0, %v988
        %v990 = vrcp.pop %v979
        %v991 = vmul.f32 1.0, %v990
        %v992 = vrcp.pop %v980
        %v993 = vmul.f32 1.0, %v992
        %v994 = vrcp.pop %v981
        %v995 = vmul.f32 1.0, %v994
        %v996 = vrcp.pop %v982
        %v997 = vmul.f32 1.0, %v996
        %v998 = vrcp.pop %v983
        %v999 = vmul.f32 1.0, %v998
        %1001 = vset.pattern.permute.xlu0 0
        %1002 = vperm.xlu0 %1001, %v985
        %v1003 = vpop.permute.xlu0 %1002
        %1006 = vset.pattern.permute.xlu0 0
        %1007 = vperm.xlu0 %1006, %v987
        %v1008 = vpop.permute.xlu0 %1007
        %1011 = vset.pattern.permute.xlu0 0
        %1012 = vperm.xlu0 %1011, %v989
        %v1013 = vpop.permute.xlu0 %1012
        %1016 = vset.pattern.permute.xlu0 0
        %1017 = vperm.xlu0 %1016, %v991
        %v1018 = vpop.permute.xlu0 %1017
        %1021 = vset.pattern.permute.xlu0 0
        %1022 = vperm.xlu0 %1021, %v993
        %v1023 = vpop.permute.xlu0 %1022
        %1026 = vset.pattern.permute.xlu0 0
        %1027 = vperm.xlu0 %1026, %v995
        %v1028 = vpop.permute.xlu0 %1027
        %1031 = vset.pattern.permute.xlu0 0
        %1032 = vperm.xlu0 %1031, %v997
        %v1033 = vpop.permute.xlu0 %1032
        %1036 = vset.pattern.permute.xlu0 0
        %1037 = vperm.xlu0 %1036, %v999
        %v1038 = vpop.permute.xlu0 %1037
        %v1040 = vmul.f32 %v652, %v1003
        %v1041 = vmul.f32 %v653, %v1003
        %v1042 = vmul.f32 %v654, %v1008
        %v1043 = vmul.f32 %v655, %v1008
        %v1044 = vmul.f32 %v656, %v1013
        %v1045 = vmul.f32 %v657, %v1013
        %v1046 = vmul.f32 %v658, %v1018
        %v1047 = vmul.f32 %v659, %v1018
        %v1048 = vmul.f32 %v660, %v1023
        %v1049 = vmul.f32 %v661, %v1023
        %v1050 = vmul.f32 %v662, %v1028
        %v1051 = vmul.f32 %v663, %v1028
        %v1052 = vmul.f32 %v664, %v1033
        %v1053 = vmul.f32 %v665, %v1033
        %v1054 = vmul.f32 %v666, %v1038
        %v1055 = vmul.f32 %v667, %v1038
        %s1056 = scalar_lea.vmem %s189, 128 [#allocation5]
        %1057 = vst [vmem:[%s1056] sm:$0xff] %v1040
        %1058 = vst [vmem:[%s1056 + $0x8] sm:$0xff] %v1041
        %1059 = vst [vmem:[%s1056 + $0x10] sm:$0xff] %v1042
        %1060 = vst [vmem:[%s1056 + $0x18] sm:$0xff] %v1043
        %1061 = vst [vmem:[%s1056 + $0x20] sm:$0xff] %v1044
        %1062 = vst [vmem:[%s1056 + $0x28] sm:$0xff] %v1045
        %1063 = vst [vmem:[%s1056 + $0x30] sm:$0xff] %v1046
        %1064 = vst [vmem:[%s1056 + $0x38] sm:$0xff] %v1047
        %1065 = vst [vmem:[%s1056 + $0x40] sm:$0xff] %v1048
        %1066 = vst [vmem:[%s1056 + $0x48] sm:$0xff] %v1049
        %1067 = vst [vmem:[%s1056 + $0x50] sm:$0xff] %v1050
        %1068 = vst [vmem:[%s1056 + $0x58] sm:$0xff] %v1051
        %1069 = vst [vmem:[%s1056 + $0x60] sm:$0xff] %v1052
        %1070 = vst [vmem:[%s1056 + $0x68] sm:$0xff] %v1053
        %1071 = vst [vmem:[%s1056 + $0x70] sm:$0xff] %v1054
        %1072 = vst [vmem:[%s1056 + $0x78] sm:$0xff] %v1055
        %s1073 = sand.u32 %s96, 1
        %s1074 = scalar_lea.sflag [#allocation4], %s1073
        %s1075 = sand.u32 %s96, 1
        %s1076 = smul.addr %s1075, 256
        %s1077 = scalar_lea.vmem [#allocation5], %s1076
        // Predicated region
        $region37: #{tpu_custom_call.1} parent=31 // pred_check
          %p1078 = pneg %p106
        $region38: #{tpu_custom_call.1} parent=31 // pred_check_branch
          %1080 = sbr.rel (%p1078) target = $region40
        $region39: #{tpu_custom_call.1} parent=31 // pred_region
          %s1081 = smul.u32 2, %s20
          %s1083 = ssub.s32 4096, 4096
          %1084 = vsyncadd %s1074, %s1083
          %s1085 = smul.addr %s1081, 16
          %s1086 = smul.addr %s1085, 128
          %s1087 = scalar_lea.hbm %s3, %s1086
          %s1088 = sshll.u32 %s1077, 4
          %s1089 = int_to_ptr.vmem [resolvable:$true] %s1088
          %1094 = dma.vmem_to_hbm [thread:$0]  %s1089, 4096, %s1087, %s1074, 256, 256, 16
        $region40: #{tpu_custom_call.1} parent=31 // pred_fallthru
          _
      $region32: #{tpu_custom_call.1} parent=5 // pred_fallthru
        _
      %p1095 = scmp.le.s32.totalorder 2, %s15
      // Predicated region
      $region41: #{tpu_custom_call.1} parent=5 // pred_check
        %p1096 = pneg %p1095
      $region42: #{tpu_custom_call.1} parent=5 // pred_check_branch
        %1098 = sbr.rel (%p1096) target = $region44
      $region43: #{tpu_custom_call.1} parent=5 // pred_region
        %s1099 = ssub.s32 %s15, 2
        // Predicated region
        $region45: #{tpu_custom_call.1} parent=43 // pred_check
          %p1100 = pneg %p112
        $region46: #{tpu_custom_call.1} parent=43 // pred_check_branch
          %1102 = sbr.rel (%p1100) target = $region48
        $region47: #{tpu_custom_call.1} parent=43 // pred_region
          %s1103 = sand.u32 %s97, 1
          %s1104 = scalar_lea.sflag [#allocation4], %s1103
          %s1105 = sand.u32 %s97, 1
          %s1106 = smul.addr %s1105, 256
          %s1107 = scalar_lea.vmem [#allocation5], %s1106
          %1108 = dma.done %s1104, 4096
        $region48: #{tpu_custom_call.1} parent=43 // pred_fallthru
          _
      $region44: #{tpu_custom_call.1} parent=5 // pred_fallthru
        _
    $region6: #{tpu_custom_call.1} parent=1 // loop_footer
      %s19 = sadd.s32 1, %s15
    $region7: #{tpu_custom_call.1} parent=1 // loop_footer_branch
      %14 = sbr.rel target = $region3
    $region8: #{tpu_custom_call.1} parent=1 // loop_exit
      _
    %1109 = vsyncpa [#allocation3], 1
    %s1110 = scalar_lea.sflag [#allocation3], 1
    %1111 = vsyncpa %s1110, 1
    %1112 = vsyncpa [#allocation4], 1
    %s1113 = scalar_lea.sflag [#allocation4], 1
    %1114 = vsyncpa %s1113, 1

</llo_original>
